<compile_context>
chip_gen: v5e
topology: v5e:2x2
jax: 0.10.0
libtpu: 0.0.40
codegen_flags: <defaults>
</compile_context>

<pallas_src>
import functools

import jax
import jax.numpy as jnp
from jax import lax
from jax.experimental import pallas as pl
from jax.experimental.pallas import tpu as pltpu


_NUM_CORES = 2          # outer "parallel" grid axis (dual TensorCore on v7x)
_OUT_SUBLANES = 8       # output tile rows (min f32 sublane tile)
_OUT_LANES = 128        # output tile lanes (lane-dense scalar slab)
_N_PARTIALS = 6         # [sum_hinge, sum_ln, sum_ld, ssq_p, ssq_n, ssq_d]


def _cdiv(a, b):
    return -(-a // b)


def _round_up(a, m):
    return _cdiv(a, m) * m


def _sum_all(x):
    """(R, C) -> (1, 1) full sum via lane reduce then sublane reduce."""
    return jnp.sum(jnp.sum(x, axis=1, keepdims=True), axis=0, keepdims=True)


def _triplet_partials_kernel(zp_ref, zn_ref, zd_ref, out_ref, acc_ref, *,
                             margin: float, batch: int, block_rows: int):
    c = pl.program_id(0)                  # core-split axis ("parallel")
    i = pl.program_id(1)                  # batch-reduction axis ("arbitrary")
    nb = pl.num_programs(1)

    @pl.when(i == 0)
    def _init():
        acc_ref[...] = jnp.zeros_like(acc_ref)

    zp = zp_ref[...]
    zn = zn_ref[...]
    zd = zd_ref[...]
    if zp.dtype != jnp.float32:           # keep f32 math for low-precision inputs
        zp = zp.astype(jnp.float32)
        zn = zn.astype(jnp.float32)
        zd = zd.astype(jnp.float32)

    dn = zp - zn
    dd = zp - zd
    l_n = jnp.sqrt(jnp.sum(dn * dn, axis=1, keepdims=True))    # (TB, 1)
    l_d = jnp.sqrt(jnp.sum(dd * dd, axis=1, keepdims=True))    # (TB, 1); torch l_d = -this
    hinge = jnp.maximum(l_n - l_d + margin, 0.0)               # relu(l_n + l_d_torch + m)

    # Mask rows past the true batch (the wrapper zero-pads up to the grid size).
    row = lax.broadcasted_iota(jnp.int32, (block_rows, 1), 0)
    global_row = (c * nb + i) * block_rows + row
    valid = global_row < batch

    s_hinge = _sum_all(jnp.where(valid, hinge, 0.0))           # (1, 1)
    s_ln = _sum_all(jnp.where(valid, l_n, 0.0))
    s_ld = _sum_all(jnp.where(valid, l_d, 0.0))
    # Padded rows are exactly zero -> contribute nothing to the squared norms.
    s_p2 = _sum_all(zp * zp)
    s_n2 = _sum_all(zn * zn)
    s_d2 = _sum_all(zd * zd)

    # Scatter the six partial sums into distinct lanes of the resident accumulator.
    lane = lax.broadcasted_iota(jnp.int32, (_OUT_SUBLANES, _OUT_LANES), 1)
    contrib = jnp.zeros((_OUT_SUBLANES, _OUT_LANES), jnp.float32)
    for k, v in enumerate((s_hinge, s_ln, s_ld, s_p2, s_n2, s_d2)):
        contrib = contrib + jnp.where(lane == k, v, 0.0)
    acc_ref[...] += contrib

    @pl.when(i == nb - 1)
    def _emit():
        out_ref[...] = acc_ref[...]


def triplet_loss(z_p: jax.Array, z_n: jax.Array, z_d: jax.Array,
                 margin: float = 0.1, l2: float = 0.0, *, block_rows: int = 512):
    """Pallas TPU implementation of tile2vec TripletLoss.forward.

    Returns (loss, l_n, l_d, l_nd) as float32 scalars.
    """
    assert z_p.shape == z_n.shape == z_d.shape and z_p.ndim == 2
    batch, dim = z_p.shape
    itemsize = jnp.dtype(z_p.dtype).itemsize

    # Tile rows: multiple of 8, capped so 3 inputs x 2 pipeline buffers stay
    # well under the scoped-VMEM defaults (16 MiB v5e / 32 MiB v6e-v7x).
    vmem_budget = 12 * 1024 * 1024
    row_bytes = 3 * 2 * dim * itemsize
    cap = max(8, (vmem_budget // row_bytes) // 8 * 8)
    tb = max(8, min(block_rows, cap, _round_up(_cdiv(batch, _NUM_CORES), 8)))

    nb = _cdiv(batch, _NUM_CORES * tb)          # reduction steps per core
    padded = _NUM_CORES * nb * tb
    if padded != batch:                          # zero-pad so every block is in-bounds
        pad = ((0, padded - batch), (0, 0))
        z_p = jnp.pad(z_p, pad)
        z_n = jnp.pad(z_n, pad)
        z_d = jnp.pad(z_d, pad)

    kernel = functools.partial(_triplet_partials_kernel, margin=float(margin),
                               batch=batch, block_rows=tb)

    in_spec = pl.BlockSpec((tb, dim), lambda c, i, nb=nb: (c * nb + i, 0))
    out_spec = pl.BlockSpec((_OUT_SUBLANES, _OUT_LANES), lambda c, i: (c, 0))

    partials = pl.pallas_call(
        kernel,
        out_shape=jax.ShapeDtypeStruct(
            (_NUM_CORES * _OUT_SUBLANES, _OUT_LANES), jnp.float32),
        grid_spec=pltpu.PrefetchScalarGridSpec(
            num_scalar_prefetch=0,
            grid=(_NUM_CORES, nb),
            in_specs=[in_spec, in_spec, in_spec],
            out_specs=out_spec,
            scratch_shapes=[pltpu.VMEM((_OUT_SUBLANES, _OUT_LANES), jnp.float32)]),
        compiler_params=pltpu.CompilerParams(
            dimension_semantics=("parallel", "arbitrary")),
        cost_estimate=pl.CostEstimate(
            flops=int(12 * batch * dim),
            transcendentals=int(2 * batch),
            bytes_accessed=int(3 * padded * dim * itemsize
                               + _NUM_CORES * _OUT_SUBLANES * _OUT_LANES * 4)),
    )(z_p, z_n, z_d)

    # Combine per-core partial sums and finalize the four scalars (cheap, in JAX).
    sums = jnp.sum(
        partials.reshape(_NUM_CORES, _OUT_SUBLANES, _OUT_LANES)[:, 0, :], axis=0)
    inv_b = jnp.float32(1.0 / batch)
    hinge_mean = sums[0] * inv_b
    l_n_mean = sums[1] * inv_b
    l_d_mean = -sums[2] * inv_b
    l_nd_mean = l_n_mean + l_d_mean
    loss = hinge_mean + l2 * (jnp.sqrt(sums[3]) + jnp.sqrt(sums[4])
                              + jnp.sqrt(sums[5]))
    return loss, l_n_mean, l_d_mean, l_nd_mean


def _reference(z_p, z_n, z_d, margin=0.1, l2=0.0):
    """Plain-JAX reference mirroring the PyTorch module exactly."""
    l_n = jnp.sqrt(((z_p - z_n) ** 2).sum(axis=1))
    l_d = -jnp.sqrt(((z_p - z_d) ** 2).sum(axis=1))
    loss = jax.nn.relu(l_n + l_d + margin)
    l_n_m = jnp.mean(l_n)
    l_d_m = jnp.mean(l_d)
    l_nd_m = jnp.mean(l_n_m + l_d_m)
    loss_m = jnp.mean(loss) + l2 * (jnp.linalg.norm(z_p) + jnp.linalg.norm(z_n)
                                    + jnp.linalg.norm(z_d))
    return loss_m, l_n_m, l_d_m, l_nd_m


if __name__ == "__main__":
    key = jax.random.PRNGKey(0)
    margin, l2 = 0.1, 0.01

    # Two cases: a multi-tile, ragged (padded+masked) batch, and a tiny
    # sub-lane-width feature dim like the original example.
    for (B, D, tb) in ((200, 128, 32), (8, 32, 512)):
        kp, kn, kd = jax.random.split(jax.random.fold_in(key, B * 1000 + D), 3)
        z_p = jax.random.normal(kp, (B, D), dtype=jnp.float32)
        z_n = jax.random.normal(kn, (B, D), dtype=jnp.float32)
        z_d = jax.random.normal(kd, (B, D), dtype=jnp.float32)

        outs = triplet_loss(z_p, z_n, z_d, margin=margin, l2=l2, block_rows=tb)
        outs = jax.block_until_ready(outs)
        refs = _reference(z_p, z_n, z_d, margin=margin, l2=l2)
        for o, r in zip(outs, refs):
            assert jnp.allclose(o, r, atol=2e-4, rtol=2e-4), (B, D, o, r)

    print("KERNEL_OK")
</pallas_src>

<mosaic_0001>
module attributes {stable_mosaic.version = 11 : i64} {
  func.func @_triplet_partials_kernel(%arg0: i32, %arg1: i32, %arg2: memref<32x128xf32, #tpu.memory_space<vmem>>, %arg3: memref<32x128xf32, #tpu.memory_space<vmem>>, %arg4: memref<32x128xf32, #tpu.memory_space<vmem>>, %arg5: memref<8x128xf32, #tpu.memory_space<vmem>>, %arg6: memref<8x128xf32, #tpu.memory_space<vmem>>) attributes {dimension_semantics = [#tpu.dimension_semantics<parallel>, #tpu.dimension_semantics<arbitrary>], iteration_bounds = array<i64: 2, 4>, scalar_prefetch = 0 : i64, scratch_operands = 1 : i64, tpu.core_type = #tpu.core_type<tc>, window_params = [{transform_indices = @transform_0, window_bounds = array<i64: 32, 128>}, {transform_indices = @transform_1, window_bounds = array<i64: 32, 128>}, {transform_indices = @transform_2, window_bounds = array<i64: 32, 128>}, {transform_indices = @transform_3, window_bounds = array<i64: 8, 128>}]} {
    %c0_i32 = arith.constant 0 : i32
    %0 = arith.cmpi eq, %arg1, %c0_i32 : i32
    %1 = arith.extui %0 : i1 to i32
    %c0_i32_0 = arith.constant 0 : i32
    %2 = arith.cmpi ne, %1, %c0_i32_0 : i32
    scf.if %2 {
      %cst_39 = arith.constant 0.000000e+00 : f32
      %112 = vector.broadcast %cst_39 : f32 to vector<8x128xf32>
      %c0_40 = arith.constant 0 : index
      %c0_41 = arith.constant 0 : index
      %113 = vector.load %arg6[%c0_40, %c0_41] : memref<8x128xf32, #tpu.memory_space<vmem>>, vector<8x128xf32>
      tpu.vector_store %arg6[%c0_40, %c0_41], %112 {strides = array<i32>} : memref<8x128xf32, #tpu.memory_space<vmem>>, vector<8x128xf32>,
    } else {
    }
    %c0 = arith.constant 0 : index
    %c0_1 = arith.constant 0 : index
    %3 = vector.load %arg2[%c0, %c0_1] : memref<32x128xf32, #tpu.memory_space<vmem>>, vector<32x128xf32>
    %c0_2 = arith.constant 0 : index
    %c0_3 = arith.constant 0 : index
    %4 = vector.load %arg3[%c0_2, %c0_3] : memref<32x128xf32, #tpu.memory_space<vmem>>, vector<32x128xf32>
    %c0_4 = arith.constant 0 : index
    %c0_5 = arith.constant 0 : index
    %5 = vector.load %arg4[%c0_4, %c0_5] : memref<32x128xf32, #tpu.memory_space<vmem>>, vector<32x128xf32>
    %6 = arith.subf %3, %4 : vector<32x128xf32>
    %7 = arith.subf %3, %5 : vector<32x128xf32>
    %8 = arith.mulf %6, %6 : vector<32x128xf32>
    %cst = arith.constant dense<0.000000e+00> : vector<32xf32>
    %9 = vector.multi_reduction <add>, %8, %cst [1] : vector<32x128xf32> to vector<32xf32>
    %10 = vector.shape_cast %9 : vector<32xf32> to vector<32x1xf32>
    %11 = math.sqrt %10 : vector<32x1xf32>
    %12 = arith.mulf %7, %7 : vector<32x128xf32>
    %cst_6 = arith.constant dense<0.000000e+00> : vector<32xf32>
    %13 = vector.multi_reduction <add>, %12, %cst_6 [1] : vector<32x128xf32> to vector<32xf32>
    %14 = vector.shape_cast %13 : vector<32xf32> to vector<32x1xf32>
    %15 = math.sqrt %14 : vector<32x1xf32>
    %16 = arith.subf %11, %15 : vector<32x1xf32>
    %cst_7 = arith.constant 1.000000e-01 : f32
    %17 = vector.broadcast %cst_7 : f32 to vector<32x1xf32>
    %18 = arith.addf %16, %17 : vector<32x1xf32>
    %cst_8 = arith.constant 0.000000e+00 : f32
    %19 = vector.broadcast %cst_8 : f32 to vector<32x1xf32>
    %20 = arith.maximumf %18, %19 : vector<32x1xf32>
    %21 = tpu.iota {dimensions = array<i32: 0>} : vector<32x1xi32>
    %c4_i32 = arith.constant 4 : i32
    %22 = arith.muli %arg0, %c4_i32 : i32
    %23 = arith.addi %22, %arg1 : i32
    %c32_i32 = arith.constant 32 : i32
    %24 = arith.muli %23, %c32_i32 : i32
    %25 = vector.broadcast %24 : i32 to vector<32x1xi32>
    %26 = arith.addi %25, %21 : vector<32x1xi32>
    %c200_i32 = arith.constant 200 : i32
    %27 = vector.broadcast %c200_i32 : i32 to vector<32x1xi32>
    %28 = arith.cmpi slt, %26, %27 : vector<32x1xi32>
    %cst_9 = arith.constant 0.000000e+00 : f32
    %29 = vector.broadcast %cst_9 : f32 to vector<32x1xf32>
    %30 = arith.select %28, %20, %29 : vector<32x1xi1>, vector<32x1xf32>
    %cst_10 = arith.constant dense<0.000000e+00> : vector<32xf32>
    %31 = vector.multi_reduction <add>, %30, %cst_10 [1] : vector<32x1xf32> to vector<32xf32>
    %32 = vector.shape_cast %31 : vector<32xf32> to vector<32x1xf32>
    %cst_11 = arith.constant dense<0.000000e+00> : vector<1xf32>
    %33 = vector.multi_reduction <add>, %32, %cst_11 [0] : vector<32x1xf32> to vector<1xf32>
    %34 = vector.shape_cast %33 : vector<1xf32> to vector<1x1xf32>
    %cst_12 = arith.constant 0.000000e+00 : f32
    %35 = vector.broadcast %cst_12 : f32 to vector<32x1xf32>
    %36 = arith.select %28, %11, %35 : vector<32x1xi1>, vector<32x1xf32>
    %cst_13 = arith.constant dense<0.000000e+00> : vector<32xf32>
    %37 = vector.multi_reduction <add>, %36, %cst_13 [1] : vector<32x1xf32> to vector<32xf32>
    %38 = vector.shape_cast %37 : vector<32xf32> to vector<32x1xf32>
    %cst_14 = arith.constant dense<0.000000e+00> : vector<1xf32>
    %39 = vector.multi_reduction <add>, %38, %cst_14 [0] : vector<32x1xf32> to vector<1xf32>
    %40 = vector.shape_cast %39 : vector<1xf32> to vector<1x1xf32>
    %cst_15 = arith.constant 0.000000e+00 : f32
    %41 = vector.broadcast %cst_15 : f32 to vector<32x1xf32>
    %42 = arith.select %28, %15, %41 : vector<32x1xi1>, vector<32x1xf32>
    %cst_16 = arith.constant dense<0.000000e+00> : vector<32xf32>
    %43 = vector.multi_reduction <add>, %42, %cst_16 [1] : vector<32x1xf32> to vector<32xf32>
    %44 = vector.shape_cast %43 : vector<32xf32> to vector<32x1xf32>
    %cst_17 = arith.constant dense<0.000000e+00> : vector<1xf32>
    %45 = vector.multi_reduction <add>, %44, %cst_17 [0] : vector<32x1xf32> to vector<1xf32>
    %46 = vector.shape_cast %45 : vector<1xf32> to vector<1x1xf32>
    %47 = arith.mulf %3, %3 : vector<32x128xf32>
    %cst_18 = arith.constant dense<0.000000e+00> : vector<32xf32>
    %48 = vector.multi_reduction <add>, %47, %cst_18 [1] : vector<32x128xf32> to vector<32xf32>
    %49 = vector.shape_cast %48 : vector<32xf32> to vector<32x1xf32>
    %cst_19 = arith.constant dense<0.000000e+00> : vector<1xf32>
    %50 = vector.multi_reduction <add>, %49, %cst_19 [0] : vector<32x1xf32> to vector<1xf32>
    %51 = vector.shape_cast %50 : vector<1xf32> to vector<1x1xf32>
    %52 = arith.mulf %4, %4 : vector<32x128xf32>
    %cst_20 = arith.constant dense<0.000000e+00> : vector<32xf32>
    %53 = vector.multi_reduction <add>, %52, %cst_20 [1] : vector<32x128xf32> to vector<32xf32>
    %54 = vector.shape_cast %53 : vector<32xf32> to vector<32x1xf32>
    %cst_21 = arith.constant dense<0.000000e+00> : vector<1xf32>
    %55 = vector.multi_reduction <add>, %54, %cst_21 [0] : vector<32x1xf32> to vector<1xf32>
    %56 = vector.shape_cast %55 : vector<1xf32> to vector<1x1xf32>
    %57 = arith.mulf %5, %5 : vector<32x128xf32>
    %cst_22 = arith.constant dense<0.000000e+00> : vector<32xf32>
    %58 = vector.multi_reduction <add>, %57, %cst_22 [1] : vector<32x128xf32> to vector<32xf32>
    %59 = vector.shape_cast %58 : vector<32xf32> to vector<32x1xf32>
    %cst_23 = arith.constant dense<0.000000e+00> : vector<1xf32>
    %60 = vector.multi_reduction <add>, %59, %cst_23 [0] : vector<32x1xf32> to vector<1xf32>
    %61 = vector.shape_cast %60 : vector<1xf32> to vector<1x1xf32>
    %62 = tpu.iota {dimensions = array<i32: 1>} : vector<8x128xi32>
    %cst_24 = arith.constant 0.000000e+00 : f32
    %63 = vector.broadcast %cst_24 : f32 to vector<8x128xf32>
    %c0_i32_25 = arith.constant 0 : i32
    %64 = vector.broadcast %c0_i32_25 : i32 to vector<8x128xi32>
    %65 = arith.cmpi eq, %62, %64 : vector<8x128xi32>
    %cst_26 = arith.constant 0.000000e+00 : f32
    %66 = vector.shape_cast %34 : vector<1x1xf32> to vector<1x1xf32>
    %67 = vector.broadcast %66 : vector<1x1xf32> to vector<8x128xf32>
    %68 = vector.broadcast %cst_26 : f32 to vector<8x128xf32>
    %69 = arith.select %65, %67, %68 : vector<8x128xi1>, vector<8x128xf32>
    %70 = arith.addf %63, %69 : vector<8x128xf32>
    %c1_i32 = arith.constant 1 : i32
    %71 = vector.broadcast %c1_i32 : i32 to vector<8x128xi32>
    %72 = arith.cmpi eq, %62, %71 : vector<8x128xi32>
    %cst_27 = arith.constant 0.000000e+00 : f32
    %73 = vector.shape_cast %40 : vector<1x1xf32> to vector<1x1xf32>
    %74 = vector.broadcast %73 : vector<1x1xf32> to vector<8x128xf32>
    %75 = vector.broadcast %cst_27 : f32 to vector<8x128xf32>
    %76 = arith.select %72, %74, %75 : vector<8x128xi1>, vector<8x128xf32>
    %77 = arith.addf %70, %76 : vector<8x128xf32>
    %c2_i32 = arith.constant 2 : i32
    %78 = vector.broadcast %c2_i32 : i32 to vector<8x128xi32>
    %79 = arith.cmpi eq, %62, %78 : vector<8x128xi32>
    %cst_28 = arith.constant 0.000000e+00 : f32
    %80 = vector.shape_cast %46 : vector<1x1xf32> to vector<1x1xf32>
    %81 = vector.broadcast %80 : vector<1x1xf32> to vector<8x128xf32>
    %82 = vector.broadcast %cst_28 : f32 to vector<8x128xf32>
    %83 = arith.select %79, %81, %82 : vector<8x128xi1>, vector<8x128xf32>
    %84 = arith.addf %77, %83 : vector<8x128xf32>
    %c3_i32 = arith.constant 3 : i32
    %85 = vector.broadcast %c3_i32 : i32 to vector<8x128xi32>
    %86 = arith.cmpi eq, %62, %85 : vector<8x128xi32>
    %cst_29 = arith.constant 0.000000e+00 : f32
    %87 = vector.shape_cast %51 : vector<1x1xf32> to vector<1x1xf32>
    %88 = vector.broadcast %87 : vector<1x1xf32> to vector<8x128xf32>
    %89 = vector.broadcast %cst_29 : f32 to vector<8x128xf32>
    %90 = arith.select %86, %88, %89 : vector<8x128xi1>, vector<8x128xf32>
    %91 = arith.addf %84, %90 : vector<8x128xf32>
    %c4_i32_30 = arith.constant 4 : i32
    %92 = vector.broadcast %c4_i32_30 : i32 to vector<8x128xi32>
    %93 = arith.cmpi eq, %62, %92 : vector<8x128xi32>
    %cst_31 = arith.constant 0.000000e+00 : f32
    %94 = vector.shape_cast %56 : vector<1x1xf32> to vector<1x1xf32>
    %95 = vector.broadcast %94 : vector<1x1xf32> to vector<8x128xf32>
    %96 = vector.broadcast %cst_31 : f32 to vector<8x128xf32>
    %97 = arith.select %93, %95, %96 : vector<8x128xi1>, vector<8x128xf32>
    %98 = arith.addf %91, %97 : vector<8x128xf32>
    %c5_i32 = arith.constant 5 : i32
    %99 = vector.broadcast %c5_i32 : i32 to vector<8x128xi32>
    %100 = arith.cmpi eq, %62, %99 : vector<8x128xi32>
    %cst_32 = arith.constant 0.000000e+00 : f32
    %101 = vector.shape_cast %61 : vector<1x1xf32> to vector<1x1xf32>
    %102 = vector.broadcast %101 : vector<1x1xf32> to vector<8x128xf32>
    %103 = vector.broadcast %cst_32 : f32 to vector<8x128xf32>
    %104 = arith.select %100, %102, %103 : vector<8x128xi1>, vector<8x128xf32>
    %105 = arith.addf %98, %104 : vector<8x128xf32>
    %c0_33 = arith.constant 0 : index
    %c0_34 = arith.constant 0 : index
    %106 = vector.load %arg6[%c0_33, %c0_34] : memref<8x128xf32, #tpu.memory_space<vmem>>, vector<8x128xf32>
    %107 = arith.addf %106, %105 : vector<8x128xf32>
    %c0_35 = arith.constant 0 : index
    %c0_36 = arith.constant 0 : index
    %108 = vector.load %arg6[%c0_35, %c0_36] : memref<8x128xf32, #tpu.memory_space<vmem>>, vector<8x128xf32>
    tpu.vector_store %arg6[%c0_35, %c0_36], %107 {strides = array<i32>} : memref<8x128xf32, #tpu.memory_space<vmem>>, vector<8x128xf32>,
    %c3_i32_37 = arith.constant 3 : i32
    %109 = arith.cmpi eq, %arg1, %c3_i32_37 : i32
    %110 = arith.extui %109 : i1 to i32
    %c0_i32_38 = arith.constant 0 : i32
    %111 = arith.cmpi ne, %110, %c0_i32_38 : i32
    scf.if %111 {
      %c0_39 = arith.constant 0 : index
      %c0_40 = arith.constant 0 : index
      %112 = vector.load %arg6[%c0_39, %c0_40] : memref<8x128xf32, #tpu.memory_space<vmem>>, vector<8x128xf32>
      %c0_41 = arith.constant 0 : index
      %c0_42 = arith.constant 0 : index
      %113 = vector.load %arg5[%c0_41, %c0_42] : memref<8x128xf32, #tpu.memory_space<vmem>>, vector<8x128xf32>
      tpu.vector_store %arg5[%c0_41, %c0_42], %112 {strides = array<i32>} : memref<8x128xf32, #tpu.memory_space<vmem>>, vector<8x128xf32>,
    } else {
    }
    return
  }
  func.func @transform_0(%arg0: i32, %arg1: i32) -> (i32, i32) {
    %c4_i32 = arith.constant 4 : i32
    %0 = arith.muli %arg0, %c4_i32 : i32
    %1 = arith.addi %0, %arg1 : i32
    %c0_i32 = arith.constant 0 : i32
    %c0_i32_0 = arith.constant 0 : i32
    return %1, %c0_i32 : i32, i32
  }
  func.func @transform_1(%arg0: i32, %arg1: i32) -> (i32, i32) {
    %c4_i32 = arith.constant 4 : i32
    %0 = arith.muli %arg0, %c4_i32 : i32
    %1 = arith.addi %0, %arg1 : i32
    %c0_i32 = arith.constant 0 : i32
    %c0_i32_0 = arith.constant 0 : i32
    return %1, %c0_i32 : i32, i32
  }
  func.func @transform_2(%arg0: i32, %arg1: i32) -> (i32, i32) {
    %c4_i32 = arith.constant 4 : i32
    %0 = arith.muli %arg0, %c4_i32 : i32
    %1 = arith.addi %0, %arg1 : i32
    %c0_i32 = arith.constant 0 : i32
    %c0_i32_0 = arith.constant 0 : i32
    return %1, %c0_i32 : i32, i32
  }
  func.func @transform_3(%arg0: i32, %arg1: i32) -> (i32, i32) {
    %c0_i32 = arith.constant 0 : i32
    %c0_i32_0 = arith.constant 0 : i32
    return %arg0, %c0_i32 : i32, i32
  }
}

</mosaic_0001>

<llo_original>
// kernel: tpu_custom_call.1
$region0: #{tpu_custom_call.1}
  #allocation0 [shape = 'u32[]', space=smem, size = 0x4, offset = 0x4, fixed_abs, tag = 'smem constant byte address 0x4 - core index']
  #allocation1 [shape = 'u32[72,128]{1,0:T(1,128)}', space=vmem, size = 0x9000, scoped, tag = 'internal scratch']
  #allocation2 [shape = 'f32[8,128]{1,0:T(8,128)}', space=vmem, size = 0x1000, scoped, tag = 'scratch operand']
  %s0 = inlined_call_operand.hbm [shape: f32[256,128], index: 0, kind: input, shape index: {}]
  %s1 = inlined_call_operand.hbm [shape: f32[256,128], index: 1, kind: input, shape index: {}]
  %s2 = inlined_call_operand.hbm [shape: f32[256,128], index: 2, kind: input, shape index: {}]
  %s3 = inlined_call_operand.hbm [shape: f32[16,128], index: 3, kind: output, shape index: {}]
  %s4 = sld [smem:[#allocation0]]
  $region65: #{tpu_custom_call.1} parent=0
    _
  %s6 = ssub.s32 1, %s4
  %s7 = scalar_select 0, %s6, %s4
  $region1: #{tpu_custom_call.1} parent=0
    #allocation3 [shape = 'u8[32768]{0}', space=vmem, size = 0x8000, scoped, tag = 'input window, operand 0']
    #allocation4 [shape = 's32[2]{0}', space=sflag, size = 0x8, scoped, tag = 'scoped memory for tpu_custom_call.1']
    #allocation5 [shape = 's32[2]{0}', space=sflag, size = 0x8, scoped, tag = 'scoped memory for tpu_custom_call.1']
    #allocation6 [shape = 'u8[32768]{0}', space=vmem, size = 0x8000, scoped, tag = 'input window, operand 1']
    #allocation7 [shape = 's32[2]{0}', space=sflag, size = 0x8, scoped, tag = 'scoped memory for tpu_custom_call.1']
    #allocation8 [shape = 'u8[32768]{0}', space=vmem, size = 0x8000, scoped, tag = 'input window, operand 2']
    #allocation9 [shape = 'u8[8192]{0}', space=vmem, size = 0x2000, scoped, tag = 'output window, operand 0']
    %8 = vsyncpa [#allocation4], 0
    %s9 = scalar_lea.sflag [#allocation4], 1
    %10 = vsyncpa %s9, 0
    %11 = vsyncpa [#allocation7], 0
    %s12 = scalar_lea.sflag [#allocation7], 1
    %13 = vsyncpa %s12, 0
    %14 = vsyncpa [#allocation5], 0
    %s15 = scalar_lea.sflag [#allocation5], 1
    %16 = vsyncpa %s15, 0
    loop: start=0, step=1, limit=10
    $region2: #{tpu_custom_call.1} parent=1 // loop_pre_header
      _
    $region3: #{tpu_custom_call.1} parent=1 // loop_header
      %s18 = sphi 0, %s22
      %p19 = scmp.ge.s32.totalorder %s18, 10
      %s25 = sphi 0, %s37
      %s26 = sphi 0, %s33
      %s27 = sphi 0, %s25
      %s28 = sphi 0, %s26
      %s29 = sphi 0, %s27
      %s30 = sphi 0, %s28
      %s44 = sphi 0, %s46
      %s47 = sphi 0, %s44
      %s48 = sphi 0, %s47
      %s64 = sphi 0, %s48
      %s74 = sphi 0, %s76
      %s77 = sphi 0, %s74
      %s78 = sphi 0, %s77
      %s94 = sphi 0, %s78
      %s104 = sphi 0, %s106
      %s107 = sphi 0, %s104
      %s108 = sphi 0, %s107
      %s124 = sphi 0, %s108
      %s130 = sphi 0, %s132
      %s133 = sphi 0, %s130
      %s134 = sphi 0, %s133
      %s150 = sphi 0, %s134
    $region4: #{tpu_custom_call.1} parent=1 // loop_header_branch
      %21 = sbr.rel (%p19) target = $region8
    $region5: #{tpu_custom_call.1} parent=1 // loop_body
      %s23 = ssub.s32 %s18, 1
      %s24 = ssub.s32 %s18, 2
      %s31 = sadd.s32 1, %s26
      %p32 = scmp.ge.s32.totalorder %s31, 4
      %s33 = scalar_select %p32, 0, %s31
      %s34 = sadd.s32 1, %s25
      %s35 = scalar_select %p32, %s34, %s25
      %p36 = scmp.ge.s32.totalorder %s35, 2
      %s37 = scalar_select %p36, 0, %s35
      %s38 = smul.u32 %s25, 4
      %s39 = sadd.s32 %s38, %s26
      %s40 = smul.u32 %s37, 4
      %s41 = sadd.s32 %s40, %s33
      %s42 = ssub.s32 %s39, %s41
      %p43 = scmp.eq.s32.totalorder %s42, 0
      %s45 = sadd.s32 %s44, 1
      %s46 = scalar_select %p43, %s44, %s45
      %p49 = pneg %p43
      %p50 = scmp.eq.s32.totalorder %s18, 7
      %p51 = por %p49, %p50
      %p52 = scmp.ne.s32.totalorder %s44, %s47
      %p53 = scmp.eq.s32.totalorder %s18, 0
      %p54 = por %p52, %p53
      %p55 = scmp.ne.s32.totalorder %s44, %s47
      %p56 = scmp.eq.s32.totalorder %s23, 7
      %p57 = por %p55, %p56
      %p58 = scmp.ne.s32.totalorder %s47, %s48
      %p59 = scmp.eq.s32.totalorder %s23, 0
      %p60 = por %p58, %p59
      %p61 = scmp.ne.s32.totalorder %s47, %s48
      %p62 = scmp.eq.s32.totalorder %s24, 7
      %p63 = por %p61, %p62
      %p65 = scmp.ne.s32.totalorder %s48, %s64
      %p66 = scmp.eq.s32.totalorder %s24, 0
      %p67 = por %p65, %p66
      %s68 = smul.u32 %s25, 4
      %s69 = sadd.s32 %s68, %s26
      %s70 = smul.u32 %s37, 4
      %s71 = sadd.s32 %s70, %s33
      %s72 = ssub.s32 %s69, %s71
      %p73 = scmp.eq.s32.totalorder %s72, 0
      %s75 = sadd.s32 %s74, 1
      %s76 = scalar_select %p73, %s74, %s75
      %p79 = pneg %p73
      %p80 = scmp.eq.s32.totalorder %s18, 7
      %p81 = por %p79, %p80
      %p82 = scmp.ne.s32.totalorder %s74, %s77
      %p83 = scmp.eq.s32.totalorder %s18, 0
      %p84 = por %p82, %p83
      %p85 = scmp.ne.s32.totalorder %s74, %s77
      %p86 = scmp.eq.s32.totalorder %s23, 7
      %p87 = por %p85, %p86
      %p88 = scmp.ne.s32.totalorder %s77, %s78
      %p89 = scmp.eq.s32.totalorder %s23, 0
      %p90 = por %p88, %p89
      %p91 = scmp.ne.s32.totalorder %s77, %s78
      %p92 = scmp.eq.s32.totalorder %s24, 7
      %p93 = por %p91, %p92
      %p95 = scmp.ne.s32.totalorder %s78, %s94
      %p96 = scmp.eq.s32.totalorder %s24, 0
      %p97 = por %p95, %p96
      %s98 = smul.u32 %s25, 4
      %s99 = sadd.s32 %s98, %s26
      %s100 = smul.u32 %s37, 4
      %s101 = sadd.s32 %s100, %s33
      %s102 = ssub.s32 %s99, %s101
      %p103 = scmp.eq.s32.totalorder %s102, 0
      %s105 = sadd.s32 %s104, 1
      %s106 = scalar_select %p103, %s104, %s105
      %p109 = pneg %p103
      %p110 = scmp.eq.s32.totalorder %s18, 7
      %p111 = por %p109, %p110
      %p112 = scmp.ne.s32.totalorder %s104, %s107
      %p113 = scmp.eq.s32.totalorder %s18, 0
      %p114 = por %p112, %p113
      %p115 = scmp.ne.s32.totalorder %s104, %s107
      %p116 = scmp.eq.s32.totalorder %s23, 7
      %p117 = por %p115, %p116
      %p118 = scmp.ne.s32.totalorder %s107, %s108
      %p119 = scmp.eq.s32.totalorder %s23, 0
      %p120 = por %p118, %p119
      %p121 = scmp.ne.s32.totalorder %s107, %s108
      %p122 = scmp.eq.s32.totalorder %s24, 7
      %p123 = por %p121, %p122
      %p125 = scmp.ne.s32.totalorder %s108, %s124
      %p126 = scmp.eq.s32.totalorder %s24, 0
      %p127 = por %p125, %p126
      %s128 = ssub.s32 %s25, %s37
      %p129 = scmp.eq.s32.totalorder %s128, 0
      %s131 = sadd.s32 %s130, 1
      %s132 = scalar_select %p129, %s130, %s131
      %p135 = pneg %p129
      %p136 = scmp.eq.s32.totalorder %s18, 7
      %p137 = por %p135, %p136
      %p138 = scmp.ne.s32.totalorder %s130, %s133
      %p139 = scmp.eq.s32.totalorder %s18, 0
      %p140 = por %p138, %p139
      %p141 = scmp.ne.s32.totalorder %s130, %s133
      %p142 = scmp.eq.s32.totalorder %s23, 7
      %p143 = por %p141, %p142
      %p144 = scmp.ne.s32.totalorder %s133, %s134
      %p145 = scmp.eq.s32.totalorder %s23, 0
      %p146 = por %p144, %p145
      %p147 = scmp.ne.s32.totalorder %s133, %s134
      %p148 = scmp.eq.s32.totalorder %s24, 7
      %p149 = por %p147, %p148
      %p151 = scmp.ne.s32.totalorder %s134, %s150
      %p152 = scmp.eq.s32.totalorder %s24, 0
      %p153 = por %p151, %p152
      %p154 = scmp.le.s32.totalorder 1, %s18
      %p155 = scmp.lt.s32.totalorder %s18, 9
      %p156 = pnand %p154, %p155
      %p157 = pneg %p156
      // Predicated region
      $region9: #{tpu_custom_call.1} parent=5 // pred_check
        _
      $region10: #{tpu_custom_call.1} parent=5 // pred_check_branch
        %159 = sbr.rel (%p156) target = $region12
      $region11: #{tpu_custom_call.1} parent=5 // pred_region
        %s160 = ssub.s32 %s18, 1
      $region12: #{tpu_custom_call.1} parent=5 // pred_fallthru
        _
      %p161 = scmp.lt.s32.totalorder %s18, 8
      // Predicated region
      $region13: #{tpu_custom_call.1} parent=5 // pred_check
        %p162 = pneg %p161
      $region14: #{tpu_custom_call.1} parent=5 // pred_check_branch
        %164 = sbr.rel (%p162) target = $region16
      $region15: #{tpu_custom_call.1} parent=5 // pred_region
        // Predicated region
        $region17: #{tpu_custom_call.1} parent=15 // pred_check
          %p165 = pneg %p54
        $region18: #{tpu_custom_call.1} parent=15 // pred_check_branch
          %167 = sbr.rel (%p165) target = $region20
        $region19: #{tpu_custom_call.1} parent=15 // pred_region
          %s168 = sand.u32 %s44, 1
          %s169 = scalar_lea.sflag [#allocation4], %s168
          %s170 = sand.u32 %s44, 1
          %s171 = smul.addr %s170, 32
          %s172 = scalar_lea.vmem [#allocation3], %s171
          %s173 = smul.u32 %s25, 4
          %s174 = sadd.s32 %s173, %s26
          %s175 = smul.u32 4, %s174
          %177 = vsyncadd %s169, 0
          %s178 = smul.addr %s175, 8
          %s179 = scalar_lea.hbm %s0, %s178
          %s180 = sshll.u32 %s179, 4
          %s181 = int_to_ptr.hbm [resolvable:$true] %s180
          %s182 = sshll.u32 %s172, 4
          %s183 = int_to_ptr.vmem [resolvable:$true] %s182
          %188 = dma.hbm_to_vmem [thread:$0]  %s181, 512, %s183, %s169, 128, 128, 8
        $region20: #{tpu_custom_call.1} parent=15 // pred_fallthru
          _
        // Predicated region
        $region21: #{tpu_custom_call.1} parent=15 // pred_check
          %p189 = pneg %p84
        $region22: #{tpu_custom_call.1} parent=15 // pred_check_branch
          %191 = sbr.rel (%p189) target = $region24
        $region23: #{tpu_custom_call.1} parent=15 // pred_region
          %s192 = sand.u32 %s18, 1
          %s193 = scalar_lea.sflag [#allocation7], %s192
          %s194 = sand.u32 %s74, 1
          %s195 = smul.addr %s194, 32
          %s196 = scalar_lea.vmem [#allocation6], %s195
          %s197 = smul.u32 %s25, 4
          %s198 = sadd.s32 %s197, %s26
          %s199 = smul.u32 4, %s198
          %201 = vsyncadd %s193, 0
          %s202 = smul.addr %s199, 8
          %s203 = scalar_lea.hbm %s1, %s202
          %s204 = sshll.u32 %s203, 4
          %s205 = int_to_ptr.hbm [resolvable:$true] %s204
          %s206 = sshll.u32 %s196, 4
          %s207 = int_to_ptr.vmem [resolvable:$true] %s206
          %212 = dma.hbm_to_vmem [thread:$0]  %s205, 512, %s207, %s193, 128, 128, 8
        $region24: #{tpu_custom_call.1} parent=15 // pred_fallthru
          _
        // Predicated region
        $region25: #{tpu_custom_call.1} parent=15 // pred_check
          %p213 = pneg %p114
        $region26: #{tpu_custom_call.1} parent=15 // pred_check_branch
          %215 = sbr.rel (%p213) target = $region28
        $region27: #{tpu_custom_call.1} parent=15 // pred_region
          %s216 = sand.u32 %s18, 1
          %s217 = scalar_lea.sflag [#allocation7], %s216
          %s218 = sand.u32 %s104, 1
          %s219 = smul.addr %s218, 32
          %s220 = scalar_lea.vmem [#allocation8], %s219
          %s221 = smul.u32 %s25, 4
          %s222 = sadd.s32 %s221, %s26
          %s223 = smul.u32 4, %s222
          %225 = vsyncadd %s217, 0
          %s226 = smul.addr %s223, 8
          %s227 = scalar_lea.hbm %s2, %s226
          %s228 = sshll.u32 %s227, 4
          %s229 = int_to_ptr.hbm [resolvable:$true] %s228
          %s230 = sshll.u32 %s220, 4
          %s231 = int_to_ptr.vmem [resolvable:$true] %s230
          %236 = dma.hbm_to_vmem [thread:$0]  %s229, 512, %s231, %s217, 128, 128, 8
        $region28: #{tpu_custom_call.1} parent=15 // pred_fallthru
          _
      $region16: #{tpu_custom_call.1} parent=5 // pred_fallthru
        _
      %p237 = scmp.le.s32.totalorder 1, %s18
      %p238 = scmp.lt.s32.totalorder %s18, 9
      %p239 = pnand %p237, %p238
      %p240 = pneg %p239
      // Predicated region
      $region29: #{tpu_custom_call.1} parent=5 // pred_check
        _
      $region30: #{tpu_custom_call.1} parent=5 // pred_check_branch
        %242 = sbr.rel (%p239) target = $region32
      $region31: #{tpu_custom_call.1} parent=5 // pred_region
        %s243 = ssub.s32 %s18, 1
        %s244 = sand.u32 %s47, 1
        %s245 = scalar_lea.sflag [#allocation4], %s244
        %s246 = sand.u32 %s47, 1
        %s247 = smul.addr %s246, 32
        %s248 = scalar_lea.vmem [#allocation3], %s247
        // Predicated region
        $region33: #{tpu_custom_call.1} parent=31 // pred_check
          %p249 = pneg %p60
        $region34: #{tpu_custom_call.1} parent=31 // pred_check_branch
          %251 = sbr.rel (%p249) target = $region36
        $region35: #{tpu_custom_call.1} parent=31 // pred_region
          %253 = dma.done %s245, 512
        $region36: #{tpu_custom_call.1} parent=31 // pred_fallthru
          _
        %s254 = sand.u32 %s23, 1
        %s255 = scalar_lea.sflag [#allocation7], %s254
        %s256 = sand.u32 %s77, 1
        %s257 = smul.addr %s256, 32
        %s258 = scalar_lea.vmem [#allocation6], %s257
        // Predicated region
        $region37: #{tpu_custom_call.1} parent=31 // pred_check
          %p259 = pneg %p90
        $region38: #{tpu_custom_call.1} parent=31 // pred_check_branch
          %261 = sbr.rel (%p259) target = $region40
        $region39: #{tpu_custom_call.1} parent=31 // pred_region
          %263 = dma.done %s255, 512
        $region40: #{tpu_custom_call.1} parent=31 // pred_fallthru
          _
        %s264 = sand.u32 %s23, 1
        %s265 = scalar_lea.sflag [#allocation7], %s264
        %s266 = sand.u32 %s107, 1
        %s267 = smul.addr %s266, 32
        %s268 = scalar_lea.vmem [#allocation8], %s267
        // Predicated region
        $region41: #{tpu_custom_call.1} parent=31 // pred_check
          %p269 = pneg %p120
        $region42: #{tpu_custom_call.1} parent=31 // pred_check_branch
          %271 = sbr.rel (%p269) target = $region44
        $region43: #{tpu_custom_call.1} parent=31 // pred_region
          %273 = dma.done %s265, 512
        $region44: #{tpu_custom_call.1} parent=31 // pred_fallthru
          _
        %s274 = sand.u32 %s47, 1
        %s275 = scalar_lea.sflag [#allocation4], %s274
        %s276 = sand.u32 %s47, 1
        %s277 = smul.addr %s276, 32
        %s278 = scalar_lea.vmem [#allocation3], %s277
        %p279 = pneg %p60
        %p280 = pneg %p57
        %s281 = sand.u32 %s23, 1
        %s282 = scalar_lea.sflag [#allocation7], %s281
        %s283 = sand.u32 %s77, 1
        %s284 = smul.addr %s283, 32
        %s285 = scalar_lea.vmem [#allocation6], %s284
        %p286 = pneg %p90
        %p287 = pneg %p87
        %s288 = sand.u32 %s23, 1
        %s289 = scalar_lea.sflag [#allocation7], %s288
        %s290 = sand.u32 %s107, 1
        %s291 = smul.addr %s290, 32
        %s292 = scalar_lea.vmem [#allocation8], %s291
        %p293 = pneg %p120
        %p294 = pneg %p117
        %p295 = pneg %p146
        %p296 = pneg %p143
        %s297 = sand.u32 %s133, 1
        %s298 = scalar_lea.sflag [#allocation5], %s297
        %s299 = sand.u32 %s133, 1
        %s300 = smul.addr %s299, 8
        %s301 = scalar_lea.vmem [#allocation9], %s300
        %s302 = smul.u32 %s27, 4
        %s303 = sadd.s32 %s302, %s28
        %s304 = smul.u32 4, %s303
        %s305 = smul.u32 %s27, 4
        %s306 = sadd.s32 %s305, %s28
        %s307 = smul.u32 4, %s306
        %s308 = smul.u32 %s27, 4
        %s309 = sadd.s32 %s308, %s28
        %s310 = smul.u32 4, %s309
        %p311 = scmp.eq.s32.totalorder %s28, 0
        // Predicated region
        $region45: #{tpu_custom_call.1} parent=31 // pred_check
          %p312 = pneg %p311
        $region46: #{tpu_custom_call.1} parent=31 // pred_check_branch
          %314 = sbr.rel (%p312) target = $region48
        $region47: #{tpu_custom_call.1} parent=31 // pred_region
          %315 = vst [vmem:[#allocation2] sm:$0xff] 0.0
        $region48: #{tpu_custom_call.1} parent=31 // pred_fallthru
          _
        %v316 = vld [vmem:[%s248] sm:$0xff]
        %v317 = vld [vmem:[%s248 + $0x8] sm:$0xff]
        %v318 = vld [vmem:[%s248 + $0x10] sm:$0xff]
        %v319 = vld [vmem:[%s248 + $0x18] sm:$0xff]
        %v320 = vld [vmem:[%s258] sm:$0xff]
        %v321 = vld [vmem:[%s258 + $0x8] sm:$0xff]
        %v322 = vld [vmem:[%s258 + $0x10] sm:$0xff]
        %v323 = vld [vmem:[%s258 + $0x18] sm:$0xff]
        %v324 = vld [vmem:[%s268] sm:$0xff]
        %v325 = vld [vmem:[%s268 + $0x8] sm:$0xff]
        %v326 = vld [vmem:[%s268 + $0x10] sm:$0xff]
        %v327 = vld [vmem:[%s268 + $0x18] sm:$0xff]
        %v328 = vsub.f32 %v316, %v320
        %v329 = vsub.f32 %v317, %v321
        %v330 = vsub.f32 %v318, %v322
        %v331 = vsub.f32 %v319, %v323
        %v332 = vsub.f32 %v316, %v324
        %v333 = vsub.f32 %v317, %v325
        %v334 = vsub.f32 %v318, %v326
        %v335 = vsub.f32 %v319, %v327
        %v336 = vmul.f32 %v328, %v328
        %v337 = vmul.f32 %v329, %v329
        %v338 = vmul.f32 %v330, %v330
        %v339 = vmul.f32 %v331, %v331
        %340 = vadd.xlane.f32.xlu0 %v336
        %v341 = vpop.xlane.xlu0 %340
        %342 = vadd.xlane.f32.xlu0 %v337
        %v343 = vpop.xlane.xlu0 %342
        %344 = vadd.xlane.f32.xlu0 %v338
        %v345 = vpop.xlane.xlu0 %344
        %346 = vadd.xlane.f32.xlu0 %v339
        %v347 = vpop.xlane.xlu0 %346
        %v348 = vrsqrt.pop %v341
        %v349 = vmul.f32 %v348, %v341
        %v350 = vmul.f32 %v349, %v348
        %v351 = vmul.f32 0.5, %v350
        %v352 = vsub.f32 1.5, %v351
        %v353 = vmul.f32 %v348, %v352
        %v354 = vmul.f32 %v341, %v353
        %vm355 = vcmp.eq.f32.partialorder %v341, inf
        %v356 = vsel %vm355, %v341, %v354
        %vm357 = vcmp.eq.f32.partialorder %v341, 0.0
        %v358 = vand.u32 %v341, 2147483648
        %v359 = vsel %vm357, %v358, %v356
        %v360 = vrsqrt.pop %v343
        %v361 = vmul.f32 %v360, %v343
        %v362 = vmul.f32 %v361, %v360
        %v363 = vmul.f32 0.5, %v362
        %v364 = vsub.f32 1.5, %v363
        %v365 = vmul.f32 %v360, %v364
        %v366 = vmul.f32 %v343, %v365
        %vm367 = vcmp.eq.f32.partialorder %v343, inf
        %v368 = vsel %vm367, %v343, %v366
        %vm369 = vcmp.eq.f32.partialorder %v343, 0.0
        %v370 = vand.u32 %v343, 2147483648
        %v371 = vsel %vm369, %v370, %v368
        %v372 = vrsqrt.pop %v345
        %v373 = vmul.f32 %v372, %v345
        %v374 = vmul.f32 %v373, %v372
        %v375 = vmul.f32 0.5, %v374
        %v376 = vsub.f32 1.5, %v375
        %v377 = vmul.f32 %v372, %v376
        %v378 = vmul.f32 %v345, %v377
        %vm379 = vcmp.eq.f32.partialorder %v345, inf
        %v380 = vsel %vm379, %v345, %v378
        %vm381 = vcmp.eq.f32.partialorder %v345, 0.0
        %v382 = vand.u32 %v345, 2147483648
        %v383 = vsel %vm381, %v382, %v380
        %v384 = vrsqrt.pop %v347
        %v385 = vmul.f32 %v384, %v347
        %v386 = vmul.f32 %v385, %v384
        %v387 = vmul.f32 0.5, %v386
        %v388 = vsub.f32 1.5, %v387
        %v389 = vmul.f32 %v384, %v388
        %v390 = vmul.f32 %v347, %v389
        %vm391 = vcmp.eq.f32.partialorder %v347, inf
        %v392 = vsel %vm391, %v347, %v390
        %vm393 = vcmp.eq.f32.partialorder %v347, 0.0
        %v394 = vand.u32 %v347, 2147483648
        %v395 = vsel %vm393, %v394, %v392
        %v396 = vmul.f32 %v332, %v332
        %v397 = vmul.f32 %v333, %v333
        %v398 = vmul.f32 %v334, %v334
        %v399 = vmul.f32 %v335, %v335
        %400 = vadd.xlane.f32.xlu0 %v396
        %v401 = vpop.xlane.xlu0 %400
        %402 = vadd.xlane.f32.xlu0 %v397
        %v403 = vpop.xlane.xlu0 %402
        %404 = vadd.xlane.f32.xlu0 %v398
        %v405 = vpop.xlane.xlu0 %404
        %406 = vadd.xlane.f32.xlu0 %v399
        %v407 = vpop.xlane.xlu0 %406
        %v408 = vrsqrt.pop %v401
        %v409 = vmul.f32 %v408, %v401
        %v410 = vmul.f32 %v409, %v408
        %v411 = vmul.f32 0.5, %v410
        %v412 = vsub.f32 1.5, %v411
        %v413 = vmul.f32 %v408, %v412
        %v414 = vmul.f32 %v401, %v413
        %vm415 = vcmp.eq.f32.partialorder %v401, inf
        %v416 = vsel %vm415, %v401, %v414
        %vm417 = vcmp.eq.f32.partialorder %v401, 0.0
        %v418 = vand.u32 %v401, 2147483648
        %v419 = vsel %vm417, %v418, %v416
        %v420 = vrsqrt.pop %v403
        %v421 = vmul.f32 %v420, %v403
        %v422 = vmul.f32 %v421, %v420
        %v423 = vmul.f32 0.5, %v422
        %v424 = vsub.f32 1.5, %v423
        %v425 = vmul.f32 %v420, %v424
        %v426 = vmul.f32 %v403, %v425
        %vm427 = vcmp.eq.f32.partialorder %v403, inf
        %v428 = vsel %vm427, %v403, %v426
        %vm429 = vcmp.eq.f32.partialorder %v403, 0.0
        %v430 = vand.u32 %v403, 2147483648
        %v431 = vsel %vm429, %v430, %v428
        %v432 = vrsqrt.pop %v405
        %v433 = vmul.f32 %v432, %v405
        %v434 = vmul.f32 %v433, %v432
        %v435 = vmul.f32 0.5, %v434
        %v436 = vsub.f32 1.5, %v435
        %v437 = vmul.f32 %v432, %v436
        %v438 = vmul.f32 %v405, %v437
        %vm439 = vcmp.eq.f32.partialorder %v405, inf
        %v440 = vsel %vm439, %v405, %v438
        %vm441 = vcmp.eq.f32.partialorder %v405, 0.0
        %v442 = vand.u32 %v405, 2147483648
        %v443 = vsel %vm441, %v442, %v440
        %v444 = vrsqrt.pop %v407
        %v445 = vmul.f32 %v444, %v407
        %v446 = vmul.f32 %v445, %v444
        %v447 = vmul.f32 0.5, %v446
        %v448 = vsub.f32 1.5, %v447
        %v449 = vmul.f32 %v444, %v448
        %v450 = vmul.f32 %v407, %v449
        %vm451 = vcmp.eq.f32.partialorder %v407, inf
        %v452 = vsel %vm451, %v407, %v450
        %vm453 = vcmp.eq.f32.partialorder %v407, 0.0
        %v454 = vand.u32 %v407, 2147483648
        %v455 = vsel %vm453, %v454, %v452
        %v456 = vsub.f32 %v359, %v419
        %v457 = vsub.f32 %v371, %v431
        %v458 = vsub.f32 %v383, %v443
        %v459 = vsub.f32 %v395, %v455
        %v460 = vadd.f32 %v456, 0.1
        %v461 = vadd.f32 %v457, 0.1
        %v462 = vadd.f32 %v458, 0.1
        %v463 = vadd.f32 %v459, 0.1
        %v464 = vmax.f32 %v460, 0.0
        %v465 = vmax.f32 %v461, 0.0
        %v466 = vmax.f32 %v462, 0.0
        %v467 = vmax.f32 %v463, 0.0
        %v468 = vlaneseq
        %v469 = vshrl.u32 %v468, 7
        %v470 = vadd.s32 %v469, 8
        %v471 = vadd.s32 %v469, 16
        %v472 = vadd.s32 %v469, 24
        %s473 = smul.u32 %s27, 4
        %s474 = sadd.s32 %s473, %s28
        %s475 = smul.u32 %s474, 32
        %v476 = vstv %s475
        %v477 = vadd.s32 %v476, %v469
        %v478 = vadd.s32 %v476, %v470
        %v479 = vadd.s32 %v476, %v471
        %v480 = vadd.s32 %v476, %v472
        %vm481 = vcmp.lt.s32.totalorder %v477, 200
        %vm482 = vcmp.lt.s32.totalorder %v478, 200
        %vm483 = vcmp.lt.s32.totalorder %v479, 200
        %vm484 = vcmp.lt.s32.totalorder %v480, 200
        %v485 = vsel %vm481, %v464, 0.0
        %v486 = vsel %vm482, %v465, 0.0
        %v487 = vsel %vm483, %v466, 0.0
        %v488 = vsel %vm484, %v467, 0.0
        %v489 = vadd.f32 %v485, 0.0
        %v490 = vadd.f32 %v486, 0.0
        %v491 = vadd.f32 %v487, 0.0
        %v492 = vadd.f32 %v488, 0.0
        %v493 = vadd.f32 %v489, %v490
        %v494 = vadd.f32 %v493, %v491
        %v495 = vadd.f32 %v494, %v492
        %v496 = vrot.slane %v495, 4
        %v497 = vadd.f32 %v495, %v496
        %v498 = vrot.slane %v497, 2
        %v499 = vadd.f32 %v497, %v498
        %v500 = vrot.slane %v499, 1
        %v501 = vadd.f32 %v499, %v500
        %v502 = vsel %vm481, %v359, 0.0
        %v503 = vsel %vm482, %v371, 0.0
        %v504 = vsel %vm483, %v383, 0.0
        %v505 = vsel %vm484, %v395, 0.0
        %v506 = vadd.f32 %v502, 0.0
        %v507 = vadd.f32 %v503, 0.0
        %v508 = vadd.f32 %v504, 0.0
        %v509 = vadd.f32 %v505, 0.0
        %v510 = vadd.f32 %v506, %v507
        %v511 = vadd.f32 %v510, %v508
        %v512 = vadd.f32 %v511, %v509
        %v513 = vrot.slane %v512, 4
        %v514 = vadd.f32 %v512, %v513
        %v515 = vrot.slane %v514, 2
        %v516 = vadd.f32 %v514, %v515
        %v517 = vrot.slane %v516, 1
        %v518 = vadd.f32 %v516, %v517
        %v519 = vsel %vm481, %v419, 0.0
        %v520 = vsel %vm482, %v431, 0.0
        %v521 = vsel %vm483, %v443, 0.0
        %v522 = vsel %vm484, %v455, 0.0
        %v523 = vadd.f32 %v519, 0.0
        %v524 = vadd.f32 %v520, 0.0
        %v525 = vadd.f32 %v521, 0.0
        %v526 = vadd.f32 %v522, 0.0
        %v527 = vadd.f32 %v523, %v524
        %v528 = vadd.f32 %v527, %v525
        %v529 = vadd.f32 %v528, %v526
        %v530 = vrot.slane %v529, 4
        %v531 = vadd.f32 %v529, %v530
        %v532 = vrot.slane %v531, 2
        %v533 = vadd.f32 %v531, %v532
        %v534 = vrot.slane %v533, 1
        %v535 = vadd.f32 %v533, %v534
        %v536 = vmul.f32 %v316, %v316
        %v537 = vmul.f32 %v317, %v317
        %v538 = vmul.f32 %v318, %v318
        %v539 = vmul.f32 %v319, %v319
        %540 = vadd.xlane.f32.xlu0 %v536
        %v541 = vpop.xlane.xlu0 %540
        %542 = vadd.xlane.f32.xlu0 %v537
        %v543 = vpop.xlane.xlu0 %542
        %544 = vadd.xlane.f32.xlu0 %v538
        %v545 = vpop.xlane.xlu0 %544
        %546 = vadd.xlane.f32.xlu0 %v539
        %v547 = vpop.xlane.xlu0 %546
        %v548 = vadd.f32 %v541, %v543
        %v549 = vadd.f32 %v548, %v545
        %v550 = vadd.f32 %v549, %v547
        %v551 = vrot.slane %v550, 4
        %v552 = vadd.f32 %v550, %v551
        %v553 = vrot.slane %v552, 2
        %v554 = vadd.f32 %v552, %v553
        %v555 = vrot.slane %v554, 1
        %v556 = vadd.f32 %v554, %v555
        %v557 = vmul.f32 %v320, %v320
        %v558 = vmul.f32 %v321, %v321
        %v559 = vmul.f32 %v322, %v322
        %v560 = vmul.f32 %v323, %v323
        %561 = vadd.xlane.f32.xlu0 %v557
        %v562 = vpop.xlane.xlu0 %561
        %563 = vadd.xlane.f32.xlu0 %v558
        %v564 = vpop.xlane.xlu0 %563
        %565 = vadd.xlane.f32.xlu0 %v559
        %v566 = vpop.xlane.xlu0 %565
        %567 = vadd.xlane.f32.xlu0 %v560
        %v568 = vpop.xlane.xlu0 %567
        %v569 = vadd.f32 %v562, %v564
        %v570 = vadd.f32 %v569, %v566
        %v571 = vadd.f32 %v570, %v568
        %v572 = vrot.slane %v571, 4
        %v573 = vadd.f32 %v571, %v572
        %v574 = vrot.slane %v573, 2
        %v575 = vadd.f32 %v573, %v574
        %v576 = vrot.slane %v575, 1
        %v577 = vadd.f32 %v575, %v576
        %v578 = vmul.f32 %v324, %v324
        %v579 = vmul.f32 %v325, %v325
        %v580 = vmul.f32 %v326, %v326
        %v581 = vmul.f32 %v327, %v327
        %582 = vadd.xlane.f32.xlu0 %v578
        %v583 = vpop.xlane.xlu0 %582
        %584 = vadd.xlane.f32.xlu0 %v579
        %v585 = vpop.xlane.xlu0 %584
        %586 = vadd.xlane.f32.xlu0 %v580
        %v587 = vpop.xlane.xlu0 %586
        %588 = vadd.xlane.f32.xlu0 %v581
        %v589 = vpop.xlane.xlu0 %588
        %v590 = vadd.f32 %v583, %v585
        %v591 = vadd.f32 %v590, %v587
        %v592 = vadd.f32 %v591, %v589
        %v593 = vrot.slane %v592, 4
        %v594 = vadd.f32 %v592, %v593
        %v595 = vrot.slane %v594, 2
        %v596 = vadd.f32 %v594, %v595
        %v597 = vrot.slane %v596, 1
        %v598 = vadd.f32 %v596, %v597
        %v599 = vlaneseq
        %v600 = vand.u32 %v599, 127
        %vm601 = vcmp.eq.s32.totalorder %v600, 0
        %v602 = vsel %vm601, %v501, 0.0
        %v603 = vadd.f32 %v602, 0.0
        %vm604 = vcmp.eq.s32.totalorder %v600, 1
        %v605 = vsel %vm604, %v518, 0.0
        %v606 = vadd.f32 %v603, %v605
        %vm607 = vcmp.eq.s32.totalorder %v600, 2
        %v608 = vsel %vm607, %v535, 0.0
        %v609 = vadd.f32 %v606, %v608
        %vm610 = vcmp.eq.s32.totalorder %v600, 3
        %v611 = vsel %vm610, %v556, 0.0
        %v612 = vadd.f32 %v609, %v611
        %vm613 = vcmp.eq.s32.totalorder %v600, 4
        %v614 = vsel %vm613, %v577, 0.0
        %v615 = vadd.f32 %v612, %v614
        %vm616 = vcmp.eq.s32.totalorder %v600, 5
        %v617 = vsel %vm616, %v598, 0.0
        %v618 = vadd.f32 %v615, %v617
        %v619 = vld [vmem:[#allocation2] sm:$0xff]
        %v620 = vadd.f32 %v619, %v618
        %621 = vst [vmem:[#allocation2] sm:$0xff] %v620
        %p622 = scmp.eq.s32.totalorder %s28, 3
        // Predicated region
        $region49: #{tpu_custom_call.1} parent=31 // pred_check
          %p623 = pneg %p622
        $region50: #{tpu_custom_call.1} parent=31 // pred_check_branch
          %625 = sbr.rel (%p623) target = $region52
        $region51: #{tpu_custom_call.1} parent=31 // pred_region
          %v626 = vld [vmem:[#allocation2] sm:$0xff]
          %627 = vst [vmem:[%s301] sm:$0xff] %v626
        $region52: #{tpu_custom_call.1} parent=31 // pred_fallthru
          _
        %s628 = sand.u32 %s133, 1
        %s629 = scalar_lea.sflag [#allocation5], %s628
        %s630 = sand.u32 %s133, 1
        %s631 = smul.addr %s630, 8
        %s632 = scalar_lea.vmem [#allocation9], %s631
        // Predicated region
        $region53: #{tpu_custom_call.1} parent=31 // pred_check
          %p633 = pneg %p143
        $region54: #{tpu_custom_call.1} parent=31 // pred_check_branch
          %635 = sbr.rel (%p633) target = $region56
        $region55: #{tpu_custom_call.1} parent=31 // pred_region
          %637 = vsyncadd %s629, 0
          %s638 = smul.addr %s27, 8
          %s639 = scalar_lea.hbm %s3, %s638
          %s641 = sshll.u32 %s632, 4
          %s642 = int_to_ptr.vmem [resolvable:$true] %s641
          %s643 = sshll.u32 %s639, 4
          %s644 = int_to_ptr.hbm [resolvable:$true] %s643
          %646 = dma.vmem_to_hbm [thread:$0]  %s642, 128, %s644, %s629
        $region56: #{tpu_custom_call.1} parent=31 // pred_fallthru
          _
      $region32: #{tpu_custom_call.1} parent=5 // pred_fallthru
        _
      %p647 = scmp.le.s32.totalorder 2, %s18
      // Predicated region
      $region57: #{tpu_custom_call.1} parent=5 // pred_check
        %p648 = pneg %p647
      $region58: #{tpu_custom_call.1} parent=5 // pred_check_branch
        %650 = sbr.rel (%p648) target = $region60
      $region59: #{tpu_custom_call.1} parent=5 // pred_region
        %s651 = ssub.s32 %s18, 2
        // Predicated region
        $region61: #{tpu_custom_call.1} parent=59 // pred_check
          %p652 = pneg %p149
        $region62: #{tpu_custom_call.1} parent=59 // pred_check_branch
          %654 = sbr.rel (%p652) target = $region64
        $region63: #{tpu_custom_call.1} parent=59 // pred_region
          %s655 = sand.u32 %s134, 1
          %s656 = scalar_lea.sflag [#allocation5], %s655
          %s657 = sand.u32 %s134, 1
          %s658 = smul.addr %s657, 8
          %s659 = scalar_lea.vmem [#allocation9], %s658
          %661 = dma.done %s656, 128
        $region64: #{tpu_custom_call.1} parent=59 // pred_fallthru
          _
      $region60: #{tpu_custom_call.1} parent=5 // pred_fallthru
        _
    $region6: #{tpu_custom_call.1} parent=1 // loop_footer
      %s22 = sadd.s32 1, %s18
    $region7: #{tpu_custom_call.1} parent=1 // loop_footer_branch
      %17 = sbr.rel target = $region3
    $region8: #{tpu_custom_call.1} parent=1 // loop_exit
      _
    %662 = vsyncpa [#allocation4], 1
    %s663 = scalar_lea.sflag [#allocation4], 1
    %664 = vsyncpa %s663, 1
    %665 = vsyncpa [#allocation7], 1
    %s666 = scalar_lea.sflag [#allocation7], 1
    %667 = vsyncpa %s666, 1
    %668 = vsyncpa [#allocation5], 1
    %s669 = scalar_lea.sflag [#allocation5], 1
    %670 = vsyncpa %s669, 1

</llo_original>
